<compile_context>
chip_gen: v6e
topology: v6e:2x2x1
jax: 0.10.0
libtpu: 0.0.40
codegen_flags: <defaults>
</compile_context>

<pallas_src>
import functools

import jax
import jax.numpy as jnp
from jax.experimental import pallas as pl
from jax.experimental.pallas import tpu as pltpu


def _binary_classifier_kernel(x_ref, w0_ref, b0_ref, w1_ref, b1_ref,
                              w2_ref, b2_ref, w3_ref, b3_ref, o_ref,
                              *, precision):
    x = x_ref[...]                                   # (TILE_B, D): batch on sublanes

    # fc0, computed transposed: contract the feature (minor) axes of w0 (8, D)
    # and x (TILE_B, D) -> (8, TILE_B).  This is the q @ k.T pattern, which the
    # MXU handles natively (no explicit relayout/transpose of the x tile).
    h = jax.lax.dot_general(
        w0_ref[...], x,
        dimension_numbers=(((1,), (1,)), ((), ())),
        precision=precision, preferred_element_type=jnp.float32)
    h = jnp.maximum(h + b0_ref[...], 0.0)            # (8, TILE_B)
    # Dropout(p=0.3) is identity in eval/inference mode.
    # TODO(synk): train-mode dropout would need pltpu.prng_* masking; omitted.

    # fc1 / fc2 / fc3: plain W @ h matmuls, batch stays lane-dense on lanes.
    h = jnp.maximum(
        jnp.dot(w1_ref[...], h, precision=precision,
                preferred_element_type=jnp.float32) + b1_ref[...], 0.0)   # (16, TILE_B)
    h = jnp.maximum(
        jnp.dot(w2_ref[...], h, precision=precision,
                preferred_element_type=jnp.float32) + b2_ref[...], 0.0)   # (32, TILE_B)
    logits = jnp.dot(w3_ref[...], h, precision=precision,
                     preferred_element_type=jnp.float32) + b3_ref[...]    # (1, TILE_B)

    o_ref[...] = jax.nn.sigmoid(logits)              # lane-dense (1, TILE_B) store


def _round_up(v, m):
    return ((v + m - 1) // m) * m


def binary_classifier_forward(x, params, *, tile_b=8192,
                              precision=jax.lax.Precision.DEFAULT):
    """x: (B, n_feature).  params: PyTorch-layout weights (out, in), biases (out,)."""
    B, D = x.shape
    w0, b0 = params["w0"], params["b0"]     # (8, D),  (8,)
    w1, b1 = params["w1"], params["b1"]     # (16, 8), (16,)
    w2, b2 = params["w2"], params["b2"]     # (32, 16),(32,)
    w3, b3 = params["w3"], params["b3"]     # (1, 32), (1,)

    # ---- batch-tile selection -------------------------------------------
    # Multiple of 256 (MXU output width on v6e/v7x; keeps output stores
    # unmasked), capped at 16384 rows so the VMEM footprint (~1.3 KiB/row with
    # the 12->128 lane-padded x tile) stays within v7x's 64 MiB VMEM.  Prefer
    # >= 2 grid steps so the "parallel" axis can split across v7x's two TCs.
    if B <= 256:
        tile_b = B                               # single full-array block
    else:
        tile_b = int(min(max(tile_b, 256), 16384))
        tile_b = _round_up(tile_b, 256)
        tile_b = min(tile_b, _round_up(B, 256))
        if pl.cdiv(B, tile_b) < 2:
            tile_b = _round_up(pl.cdiv(B, 2), 256)
    n_tiles = pl.cdiv(B, tile_b)
    b_pad = n_tiles * tile_b                     # output stays block-aligned

    # ---- explicit VMEM budget ---------------------------------------------
    itemsize = jnp.dtype(x.dtype).itemsize
    vmem_bytes = tile_b * (
        2 * _round_up(D, 128) * itemsize         # double-buffered x tile (lane-padded)
        + 2 * 8 * 4                              # double-buffered (1, tile_b) output (sublane-padded)
        + (8 + 16 + 32 + 8) * 4                  # live f32 activations
    ) + 2 * 1024 * 1024                          # resident weights + compiler slack
    vmem_limit = int(min(max(vmem_bytes, 32 * 1024 * 1024), 48 * 1024 * 1024))

    # Biases as (out, 1) columns so they broadcast along the lane (batch) axis.
    as_col = lambda b: b.reshape(-1, 1).astype(jnp.float32)
    f32 = lambda w: w.astype(jnp.float32)

    def resident(arr):
        # Whole-array block, constant index map -> stays in VMEM across the grid.
        return pl.BlockSpec(arr.shape, lambda i: (0,) * arr.ndim)

    # NOTE: x is passed through in its native dtype (no wrapper-side astype/pad:
    # both would be an extra full HBM pass over the only large input).
    args = (x,
            f32(w0), as_col(b0),
            f32(w1), as_col(b1),
            f32(w2), as_col(b2),
            f32(w3), as_col(b3))

    kernel = functools.partial(_binary_classifier_kernel, precision=precision)

    out = pl.pallas_call(
        kernel,
        out_shape=jax.ShapeDtypeStruct((1, b_pad), jnp.float32),
        grid=(n_tiles,),
        in_specs=[pl.BlockSpec((tile_b, D), lambda i: (i, 0))]
                 + [resident(a) for a in args[1:]],
        out_specs=pl.BlockSpec((1, tile_b), lambda i: (0, i)),
        compiler_params=pltpu.CompilerParams(
            dimension_semantics=("parallel",),
            vmem_limit_bytes=vmem_limit),
    )(*args)

    # Ragged-tail lanes (B..b_pad) are garbage by construction; slice them off.
    return out[0, :B].reshape(B, 1)


def reference_forward(x, params):
    def dense(h, w, b):
        return jnp.dot(h, w.T, precision=jax.lax.Precision.HIGHEST,
                       preferred_element_type=jnp.float32) + b
    h = jnp.maximum(dense(x, params["w0"], params["b0"]), 0.0)
    h = jnp.maximum(dense(h, params["w1"], params["b1"]), 0.0)
    h = jnp.maximum(dense(h, params["w2"], params["b2"]), 0.0)
    return jax.nn.sigmoid(dense(h, params["w3"], params["b3"]))


if __name__ == "__main__":
    n_feature = 12
    B = 300        # not a multiple of the tile: exercises the ragged last block

    key = jax.random.PRNGKey(0)
    kx, k0, k1, k2, k3, kb0, kb1, kb2, kb3 = jax.random.split(key, 9)

    x = jax.random.normal(kx, (B, n_feature), dtype=jnp.float32)
    params = {
        "w0": jax.random.normal(k0, (8, n_feature), dtype=jnp.float32) * 0.2,
        "b0": jax.random.normal(kb0, (8,), dtype=jnp.float32) * 0.1,
        "w1": jax.random.normal(k1, (16, 8), dtype=jnp.float32) * 0.2,
        "b1": jax.random.normal(kb1, (16,), dtype=jnp.float32) * 0.1,
        "w2": jax.random.normal(k2, (32, 16), dtype=jnp.float32) * 0.2,
        "b2": jax.random.normal(kb2, (32,), dtype=jnp.float32) * 0.1,
        "w3": jax.random.normal(k3, (1, 32), dtype=jnp.float32) * 0.2,
        "b3": jax.random.normal(kb3, (1,), dtype=jnp.float32) * 0.1,
    }

    # Production path: default (single-pass bf16) MXU precision -- fastest.
    out_fast = jax.block_until_ready(binary_classifier_forward(x, params))
    # High-precision path (bf16_3x ~= f32) -- tight numerical check.
    out_hi = jax.block_until_ready(
        binary_classifier_forward(x, params, precision=jax.lax.Precision.HIGH))

    ref = reference_forward(x, params)
    assert out_fast.shape == (B, 1), out_fast.shape
    assert out_hi.shape == (B, 1), out_hi.shape
    assert jnp.allclose(out_hi, ref, atol=1e-4, rtol=1e-4), \
        float(jnp.max(jnp.abs(out_hi - ref)))
    assert jnp.allclose(out_fast, ref, atol=5e-3, rtol=5e-3), \
        float(jnp.max(jnp.abs(out_fast - ref)))

    print("KERNEL_OK")
</pallas_src>

<mosaic_0001>
module attributes {stable_mosaic.version = 11 : i64} {
  func.func @_binary_classifier_kernel(%arg0: i32, %arg1: memref<256x12xf32, #tpu.memory_space<vmem>>, %arg2: memref<8x12xf32, #tpu.memory_space<vmem>>, %arg3: memref<8x1xf32, #tpu.memory_space<vmem>>, %arg4: memref<16x8xf32, #tpu.memory_space<vmem>>, %arg5: memref<16x1xf32, #tpu.memory_space<vmem>>, %arg6: memref<32x16xf32, #tpu.memory_space<vmem>>, %arg7: memref<32x1xf32, #tpu.memory_space<vmem>>, %arg8: memref<1x32xf32, #tpu.memory_space<vmem>>, %arg9: memref<1x1xf32, #tpu.memory_space<vmem>>, %arg10: memref<1x256xf32, #tpu.memory_space<vmem>>) attributes {dimension_semantics = [#tpu.dimension_semantics<parallel>], iteration_bounds = array<i64: 2>, scalar_prefetch = 0 : i64, scratch_operands = 0 : i64, tpu.core_type = #tpu.core_type<tc>, window_params = [{transform_indices = @transform_0, window_bounds = array<i64: 256, 12>}, {pipeline_mode = #tpu.pipeline_mode<synchronous>, transform_indices = @transform_1, window_bounds = array<i64: 8, 12>}, {pipeline_mode = #tpu.pipeline_mode<synchronous>, transform_indices = @transform_2, window_bounds = array<i64: 8, 1>}, {pipeline_mode = #tpu.pipeline_mode<synchronous>, transform_indices = @transform_3, window_bounds = array<i64: 16, 8>}, {pipeline_mode = #tpu.pipeline_mode<synchronous>, transform_indices = @transform_4, window_bounds = array<i64: 16, 1>}, {pipeline_mode = #tpu.pipeline_mode<synchronous>, transform_indices = @transform_5, window_bounds = array<i64: 32, 16>}, {pipeline_mode = #tpu.pipeline_mode<synchronous>, transform_indices = @transform_6, window_bounds = array<i64: 32, 1>}, {pipeline_mode = #tpu.pipeline_mode<synchronous>, transform_indices = @transform_7, window_bounds = array<i64: 1, 32>}, {pipeline_mode = #tpu.pipeline_mode<synchronous>, transform_indices = @transform_8, window_bounds = array<i64: 1, 1>}, {transform_indices = @transform_9, window_bounds = array<i64: 1, 256>}]} {
    %c0 = arith.constant 0 : index
    %c0_0 = arith.constant 0 : index
    %0 = vector.load %arg1[%c0, %c0_0] : memref<256x12xf32, #tpu.memory_space<vmem>>, vector<256x12xf32>
    %c0_1 = arith.constant 0 : index
    %c0_2 = arith.constant 0 : index
    %1 = vector.load %arg2[%c0_1, %c0_2] : memref<8x12xf32, #tpu.memory_space<vmem>>, vector<8x12xf32>
    %cst = arith.constant dense<0.000000e+00> : vector<8x256xf32>
    %2 = tpu.matmul %1, %0, %cst {dimension_numbers = #tpu.dot_dimension_numbers<[1], [1], [0], [0], [0, 0, 1, 0], [], []>} : vector<8x12xf32>, vector<256x12xf32>, vector<8x256xf32> -> vector<8x256xf32>
    %c0_3 = arith.constant 0 : index
    %c0_4 = arith.constant 0 : index
    %3 = vector.load %arg3[%c0_3, %c0_4] : memref<8x1xf32, #tpu.memory_space<vmem>>, vector<8x1xf32>
    %4 = vector.broadcast %3 : vector<8x1xf32> to vector<8x256xf32>
    %5 = arith.addf %2, %4 : vector<8x256xf32>
    %cst_5 = arith.constant 0.000000e+00 : f32
    %6 = vector.broadcast %cst_5 : f32 to vector<8x256xf32>
    %7 = arith.maximumf %5, %6 : vector<8x256xf32>
    %c0_6 = arith.constant 0 : index
    %c0_7 = arith.constant 0 : index
    %8 = vector.load %arg4[%c0_6, %c0_7] : memref<16x8xf32, #tpu.memory_space<vmem>>, vector<16x8xf32>
    %cst_8 = arith.constant dense<0.000000e+00> : vector<16x256xf32>
    %9 = tpu.matmul %8, %7, %cst_8 {dimension_numbers = #tpu.dot_dimension_numbers<[1], [0], [0], [1], [0, 0, 1, 1], [], []>} : vector<16x8xf32>, vector<8x256xf32>, vector<16x256xf32> -> vector<16x256xf32>
    %c0_9 = arith.constant 0 : index
    %c0_10 = arith.constant 0 : index
    %10 = vector.load %arg5[%c0_9, %c0_10] : memref<16x1xf32, #tpu.memory_space<vmem>>, vector<16x1xf32>
    %11 = vector.broadcast %10 : vector<16x1xf32> to vector<16x256xf32>
    %12 = arith.addf %9, %11 : vector<16x256xf32>
    %cst_11 = arith.constant 0.000000e+00 : f32
    %13 = vector.broadcast %cst_11 : f32 to vector<16x256xf32>
    %14 = arith.maximumf %12, %13 : vector<16x256xf32>
    %c0_12 = arith.constant 0 : index
    %c0_13 = arith.constant 0 : index
    %15 = vector.load %arg6[%c0_12, %c0_13] : memref<32x16xf32, #tpu.memory_space<vmem>>, vector<32x16xf32>
    %cst_14 = arith.constant dense<0.000000e+00> : vector<32x256xf32>
    %16 = tpu.matmul %15, %14, %cst_14 {dimension_numbers = #tpu.dot_dimension_numbers<[1], [0], [0], [1], [0, 0, 1, 1], [], []>} : vector<32x16xf32>, vector<16x256xf32>, vector<32x256xf32> -> vector<32x256xf32>
    %c0_15 = arith.constant 0 : index
    %c0_16 = arith.constant 0 : index
    %17 = vector.load %arg7[%c0_15, %c0_16] : memref<32x1xf32, #tpu.memory_space<vmem>>, vector<32x1xf32>
    %18 = vector.broadcast %17 : vector<32x1xf32> to vector<32x256xf32>
    %19 = arith.addf %16, %18 : vector<32x256xf32>
    %cst_17 = arith.constant 0.000000e+00 : f32
    %20 = vector.broadcast %cst_17 : f32 to vector<32x256xf32>
    %21 = arith.maximumf %19, %20 : vector<32x256xf32>
    %c0_18 = arith.constant 0 : index
    %c0_19 = arith.constant 0 : index
    %22 = vector.load %arg8[%c0_18, %c0_19] : memref<1x32xf32, #tpu.memory_space<vmem>>, vector<1x32xf32>
    %cst_20 = arith.constant dense<0.000000e+00> : vector<1x256xf32>
    %23 = tpu.matmul %22, %21, %cst_20 {dimension_numbers = #tpu.dot_dimension_numbers<[1], [0], [0], [1], [0, 0, 1, 1], [], []>} : vector<1x32xf32>, vector<32x256xf32>, vector<1x256xf32> -> vector<1x256xf32>
    %c0_21 = arith.constant 0 : index
    %c0_22 = arith.constant 0 : index
    %24 = vector.load %arg9[%c0_21, %c0_22] : memref<1x1xf32, #tpu.memory_space<vmem>>, vector<1x1xf32>
    %25 = vector.broadcast %24 : vector<1x1xf32> to vector<1x256xf32>
    %26 = arith.addf %23, %25 : vector<1x256xf32>
    %27 = arith.negf %26 : vector<1x256xf32>
    %28 = math.exp %27 : vector<1x256xf32>
    %cst_23 = arith.constant 1.000000e+00 : f32
    %29 = vector.broadcast %cst_23 : f32 to vector<1x256xf32>
    %30 = arith.addf %29, %28 : vector<1x256xf32>
    %31 = arith.divf %29, %30 : vector<1x256xf32>
    %c0_24 = arith.constant 0 : index
    %c0_25 = arith.constant 0 : index
    %32 = vector.load %arg10[%c0_24, %c0_25] : memref<1x256xf32, #tpu.memory_space<vmem>>, vector<1x256xf32>
    tpu.vector_store %arg10[%c0_24, %c0_25], %31 {strides = array<i32>} : memref<1x256xf32, #tpu.memory_space<vmem>>, vector<1x256xf32>,
    return
  }
  func.func @transform_0(%arg0: i32) -> (i32, i32) {
    %c0_i32 = arith.constant 0 : i32
    %c0_i32_0 = arith.constant 0 : i32
    return %arg0, %c0_i32 : i32, i32
  }
  func.func @transform_1(%arg0: i32) -> (i32, i32) {
    %c0_i32 = arith.constant 0 : i32
    %c0_i32_0 = arith.constant 0 : i32
    %c0_i32_1 = arith.constant 0 : i32
    return %c0_i32, %c0_i32_0 : i32, i32
  }
  func.func @transform_2(%arg0: i32) -> (i32, i32) {
    %c0_i32 = arith.constant 0 : i32
    %c0_i32_0 = arith.constant 0 : i32
    %c0_i32_1 = arith.constant 0 : i32
    return %c0_i32, %c0_i32_0 : i32, i32
  }
  func.func @transform_3(%arg0: i32) -> (i32, i32) {
    %c0_i32 = arith.constant 0 : i32
    %c0_i32_0 = arith.constant 0 : i32
    %c0_i32_1 = arith.constant 0 : i32
    return %c0_i32, %c0_i32_0 : i32, i32
  }
  func.func @transform_4(%arg0: i32) -> (i32, i32) {
    %c0_i32 = arith.constant 0 : i32
    %c0_i32_0 = arith.constant 0 : i32
    %c0_i32_1 = arith.constant 0 : i32
    return %c0_i32, %c0_i32_0 : i32, i32
  }
  func.func @transform_5(%arg0: i32) -> (i32, i32) {
    %c0_i32 = arith.constant 0 : i32
    %c0_i32_0 = arith.constant 0 : i32
    %c0_i32_1 = arith.constant 0 : i32
    return %c0_i32, %c0_i32_0 : i32, i32
  }
  func.func @transform_6(%arg0: i32) -> (i32, i32) {
    %c0_i32 = arith.constant 0 : i32
    %c0_i32_0 = arith.constant 0 : i32
    %c0_i32_1 = arith.constant 0 : i32
    return %c0_i32, %c0_i32_0 : i32, i32
  }
  func.func @transform_7(%arg0: i32) -> (i32, i32) {
    %c0_i32 = arith.constant 0 : i32
    %c0_i32_0 = arith.constant 0 : i32
    %c0_i32_1 = arith.constant 0 : i32
    return %c0_i32, %c0_i32_0 : i32, i32
  }
  func.func @transform_8(%arg0: i32) -> (i32, i32) {
    %c0_i32 = arith.constant 0 : i32
    %c0_i32_0 = arith.constant 0 : i32
    %c0_i32_1 = arith.constant 0 : i32
    return %c0_i32, %c0_i32_0 : i32, i32
  }
  func.func @transform_9(%arg0: i32) -> (i32, i32) {
    %c0_i32 = arith.constant 0 : i32
    %c0_i32_0 = arith.constant 0 : i32
    return %c0_i32, %arg0 : i32, i32
  }
}

</mosaic_0001>

<llo_original>
// kernel: tpu_custom_call.1
$region0: #{tpu_custom_call.1}
  #allocation0 [shape = 'u32[]', space=smem, size = 0x4, offset = 0x4, fixed_abs, tag = 'smem constant byte address 0x4 - core index']
  #allocation1 [shape = 'u32[144,128]{1,0:T(1,128)}', space=vmem, size = 0x12000, scoped, tag = 'internal scratch']
  #allocation2 [shape = 'f32[1,1]{1,0:T(1,128)S(1)}', space=vmem, size = 0x200, scoped, tag = 'scoped memory for tpu_custom_call.1']
  %s0 = inlined_call_operand.vmem [shape: f32[300,12], index: 0, kind: input, shape index: {}]
  %s1 = inlined_call_operand.vmem [shape: f32[8,12], index: 1, kind: input, shape index: {}]
  %s2 = inlined_call_operand.vmem [shape: f32[8,1], index: 2, kind: input, shape index: {}]
  %s3 = inlined_call_operand.vmem [shape: f32[16,8], index: 3, kind: input, shape index: {}]
  %s4 = inlined_call_operand.vmem [shape: f32[16,1], index: 4, kind: input, shape index: {}]
  %s5 = inlined_call_operand.vmem [shape: f32[32,16], index: 5, kind: input, shape index: {}]
  %s6 = inlined_call_operand.vmem [shape: f32[32,1], index: 6, kind: input, shape index: {}]
  %s7 = inlined_call_operand.vmem [shape: f32[1,32], index: 7, kind: input, shape index: {}]
  %s8 = inlined_call_operand.<no memory space> [shape: f32[1,1], index: 8, kind: input, shape index: {}]
  %s9 = inlined_call_operand.hbm [shape: f32[1,512], index: 9, kind: output, shape index: {}]
  %s10 = sld [smem:[#allocation0]]
  $region69: #{tpu_custom_call.1} parent=0
    _
  %s12 = ssub.s32 1, %s10
  %s13 = scalar_select 0, %s12, %s10
  %v14 = vstv %s8
  %15 = vst [vmem:[#allocation2] sm:$0x1] %v14
  $region1: #{tpu_custom_call.1} parent=0
    #allocation3 [shape = 'u8[2048]{0}', space=vmem, size = 0x800, scoped, tag = 'output window, operand 0']
    #allocation4 [shape = 's32[2]{0}', space=sflag, size = 0x8, scoped, tag = 'scoped memory for tpu_custom_call.1']
    %16 = vsyncpa [#allocation4], 0
    %s17 = scalar_lea.sflag [#allocation4], 1
    %18 = vsyncpa %s17, 0
    loop: start=0, step=1, limit=4
    $region2: #{tpu_custom_call.1} parent=1 // loop_pre_header
      _
    $region3: #{tpu_custom_call.1} parent=1 // loop_header
      %s20 = sphi 0, %s24
      %p21 = scmp.ge.s32.totalorder %s20, 4
      %s30 = sphi 0, %s32
      %s33 = sphi 0, %s30
      %s34 = sphi 0, %s33
      %s50 = sphi 0, %s34
      %s54 = sphi 0, %s54
      %s56 = sphi 0, %s54
      %s57 = sphi 0, %s56
      %s71 = sphi 0, %s57
      %s75 = sphi 0, %s75
      %s77 = sphi 0, %s75
      %s78 = sphi 0, %s77
      %s92 = sphi 0, %s78
      %s96 = sphi 0, %s96
      %s98 = sphi 0, %s96
      %s99 = sphi 0, %s98
      %s113 = sphi 0, %s99
      %s117 = sphi 0, %s117
      %s119 = sphi 0, %s117
      %s120 = sphi 0, %s119
      %s134 = sphi 0, %s120
      %s138 = sphi 0, %s138
      %s140 = sphi 0, %s138
      %s141 = sphi 0, %s140
      %s155 = sphi 0, %s141
      %s159 = sphi 0, %s159
      %s161 = sphi 0, %s159
      %s162 = sphi 0, %s161
      %s176 = sphi 0, %s162
      %s180 = sphi 0, %s180
      %s182 = sphi 0, %s180
      %s183 = sphi 0, %s182
      %s197 = sphi 0, %s183
      %s201 = sphi 0, %s201
      %s203 = sphi 0, %s201
      %s204 = sphi 0, %s203
      %s218 = sphi 0, %s204
      %s224 = sphi 0, %s226
      %s227 = sphi 0, %s224
      %s228 = sphi 0, %s227
      %s244 = sphi 0, %s228
    $region4: #{tpu_custom_call.1} parent=1 // loop_header_branch
      %23 = sbr.rel (%p21) target = $region8
    $region5: #{tpu_custom_call.1} parent=1 // loop_body
      %s25 = ssub.s32 %s20, 1
      %s26 = ssub.s32 %s20, 2
      %s27 = sadd.s32 %s20, 1
      %s28 = ssub.s32 %s20, %s27
      %p29 = scmp.eq.s32.totalorder %s28, 0
      %s31 = sadd.s32 %s30, 1
      %s32 = scalar_select %p29, %s30, %s31
      %p35 = pneg %p29
      %p36 = scmp.eq.s32.totalorder %s20, 1
      %p37 = por %p35, %p36
      %p38 = scmp.ne.s32.totalorder %s30, %s33
      %p39 = scmp.eq.s32.totalorder %s20, 0
      %p40 = por %p38, %p39
      %p41 = scmp.ne.s32.totalorder %s30, %s33
      %p42 = scmp.eq.s32.totalorder %s25, 1
      %p43 = por %p41, %p42
      %p44 = scmp.ne.s32.totalorder %s33, %s34
      %p45 = scmp.eq.s32.totalorder %s25, 0
      %p46 = por %p44, %p45
      %p47 = scmp.ne.s32.totalorder %s33, %s34
      %p48 = scmp.eq.s32.totalorder %s26, 1
      %p49 = por %p47, %p48
      %p51 = scmp.ne.s32.totalorder %s34, %s50
      %p52 = scmp.eq.s32.totalorder %s26, 0
      %p53 = por %p51, %p52
      %s55 = sadd.s32 %s54, 1
      %p58 = scmp.eq.s32.totalorder %s20, 1
      %p59 = scmp.ne.s32.totalorder %s54, %s56
      %p60 = scmp.eq.s32.totalorder %s20, 0
      %p61 = por %p59, %p60
      %p62 = scmp.ne.s32.totalorder %s54, %s56
      %p63 = scmp.eq.s32.totalorder %s25, 1
      %p64 = por %p62, %p63
      %p65 = scmp.ne.s32.totalorder %s56, %s57
      %p66 = scmp.eq.s32.totalorder %s25, 0
      %p67 = por %p65, %p66
      %p68 = scmp.ne.s32.totalorder %s56, %s57
      %p69 = scmp.eq.s32.totalorder %s26, 1
      %p70 = por %p68, %p69
      %p72 = scmp.ne.s32.totalorder %s57, %s71
      %p73 = scmp.eq.s32.totalorder %s26, 0
      %p74 = por %p72, %p73
      %s76 = sadd.s32 %s75, 1
      %p79 = scmp.eq.s32.totalorder %s20, 1
      %p80 = scmp.ne.s32.totalorder %s75, %s77
      %p81 = scmp.eq.s32.totalorder %s20, 0
      %p82 = por %p80, %p81
      %p83 = scmp.ne.s32.totalorder %s75, %s77
      %p84 = scmp.eq.s32.totalorder %s25, 1
      %p85 = por %p83, %p84
      %p86 = scmp.ne.s32.totalorder %s77, %s78
      %p87 = scmp.eq.s32.totalorder %s25, 0
      %p88 = por %p86, %p87
      %p89 = scmp.ne.s32.totalorder %s77, %s78
      %p90 = scmp.eq.s32.totalorder %s26, 1
      %p91 = por %p89, %p90
      %p93 = scmp.ne.s32.totalorder %s78, %s92
      %p94 = scmp.eq.s32.totalorder %s26, 0
      %p95 = por %p93, %p94
      %s97 = sadd.s32 %s96, 1
      %p100 = scmp.eq.s32.totalorder %s20, 1
      %p101 = scmp.ne.s32.totalorder %s96, %s98
      %p102 = scmp.eq.s32.totalorder %s20, 0
      %p103 = por %p101, %p102
      %p104 = scmp.ne.s32.totalorder %s96, %s98
      %p105 = scmp.eq.s32.totalorder %s25, 1
      %p106 = por %p104, %p105
      %p107 = scmp.ne.s32.totalorder %s98, %s99
      %p108 = scmp.eq.s32.totalorder %s25, 0
      %p109 = por %p107, %p108
      %p110 = scmp.ne.s32.totalorder %s98, %s99
      %p111 = scmp.eq.s32.totalorder %s26, 1
      %p112 = por %p110, %p111
      %p114 = scmp.ne.s32.totalorder %s99, %s113
      %p115 = scmp.eq.s32.totalorder %s26, 0
      %p116 = por %p114, %p115
      %s118 = sadd.s32 %s117, 1
      %p121 = scmp.eq.s32.totalorder %s20, 1
      %p122 = scmp.ne.s32.totalorder %s117, %s119
      %p123 = scmp.eq.s32.totalorder %s20, 0
      %p124 = por %p122, %p123
      %p125 = scmp.ne.s32.totalorder %s117, %s119
      %p126 = scmp.eq.s32.totalorder %s25, 1
      %p127 = por %p125, %p126
      %p128 = scmp.ne.s32.totalorder %s119, %s120
      %p129 = scmp.eq.s32.totalorder %s25, 0
      %p130 = por %p128, %p129
      %p131 = scmp.ne.s32.totalorder %s119, %s120
      %p132 = scmp.eq.s32.totalorder %s26, 1
      %p133 = por %p131, %p132
      %p135 = scmp.ne.s32.totalorder %s120, %s134
      %p136 = scmp.eq.s32.totalorder %s26, 0
      %p137 = por %p135, %p136
      %s139 = sadd.s32 %s138, 1
      %p142 = scmp.eq.s32.totalorder %s20, 1
      %p143 = scmp.ne.s32.totalorder %s138, %s140
      %p144 = scmp.eq.s32.totalorder %s20, 0
      %p145 = por %p143, %p144
      %p146 = scmp.ne.s32.totalorder %s138, %s140
      %p147 = scmp.eq.s32.totalorder %s25, 1
      %p148 = por %p146, %p147
      %p149 = scmp.ne.s32.totalorder %s140, %s141
      %p150 = scmp.eq.s32.totalorder %s25, 0
      %p151 = por %p149, %p150
      %p152 = scmp.ne.s32.totalorder %s140, %s141
      %p153 = scmp.eq.s32.totalorder %s26, 1
      %p154 = por %p152, %p153
      %p156 = scmp.ne.s32.totalorder %s141, %s155
      %p157 = scmp.eq.s32.totalorder %s26, 0
      %p158 = por %p156, %p157
      %s160 = sadd.s32 %s159, 1
      %p163 = scmp.eq.s32.totalorder %s20, 1
      %p164 = scmp.ne.s32.totalorder %s159, %s161
      %p165 = scmp.eq.s32.totalorder %s20, 0
      %p166 = por %p164, %p165
      %p167 = scmp.ne.s32.totalorder %s159, %s161
      %p168 = scmp.eq.s32.totalorder %s25, 1
      %p169 = por %p167, %p168
      %p170 = scmp.ne.s32.totalorder %s161, %s162
      %p171 = scmp.eq.s32.totalorder %s25, 0
      %p172 = por %p170, %p171
      %p173 = scmp.ne.s32.totalorder %s161, %s162
      %p174 = scmp.eq.s32.totalorder %s26, 1
      %p175 = por %p173, %p174
      %p177 = scmp.ne.s32.totalorder %s162, %s176
      %p178 = scmp.eq.s32.totalorder %s26, 0
      %p179 = por %p177, %p178
      %s181 = sadd.s32 %s180, 1
      %p184 = scmp.eq.s32.totalorder %s20, 1
      %p185 = scmp.ne.s32.totalorder %s180, %s182
      %p186 = scmp.eq.s32.totalorder %s20, 0
      %p187 = por %p185, %p186
      %p188 = scmp.ne.s32.totalorder %s180, %s182
      %p189 = scmp.eq.s32.totalorder %s25, 1
      %p190 = por %p188, %p189
      %p191 = scmp.ne.s32.totalorder %s182, %s183
      %p192 = scmp.eq.s32.totalorder %s25, 0
      %p193 = por %p191, %p192
      %p194 = scmp.ne.s32.totalorder %s182, %s183
      %p195 = scmp.eq.s32.totalorder %s26, 1
      %p196 = por %p194, %p195
      %p198 = scmp.ne.s32.totalorder %s183, %s197
      %p199 = scmp.eq.s32.totalorder %s26, 0
      %p200 = por %p198, %p199
      %s202 = sadd.s32 %s201, 1
      %p205 = scmp.eq.s32.totalorder %s20, 1
      %p206 = scmp.ne.s32.totalorder %s201, %s203
      %p207 = scmp.eq.s32.totalorder %s20, 0
      %p208 = por %p206, %p207
      %p209 = scmp.ne.s32.totalorder %s201, %s203
      %p210 = scmp.eq.s32.totalorder %s25, 1
      %p211 = por %p209, %p210
      %p212 = scmp.ne.s32.totalorder %s203, %s204
      %p213 = scmp.eq.s32.totalorder %s25, 0
      %p214 = por %p212, %p213
      %p215 = scmp.ne.s32.totalorder %s203, %s204
      %p216 = scmp.eq.s32.totalorder %s26, 1
      %p217 = por %p215, %p216
      %p219 = scmp.ne.s32.totalorder %s204, %s218
      %p220 = scmp.eq.s32.totalorder %s26, 0
      %p221 = por %p219, %p220
      %s222 = ssub.s32 %s20, %s27
      %p223 = scmp.eq.s32.totalorder %s222, 0
      %s225 = sadd.s32 %s224, 1
      %s226 = scalar_select %p223, %s224, %s225
      %p229 = pneg %p223
      %p230 = scmp.eq.s32.totalorder %s20, 1
      %p231 = por %p229, %p230
      %p232 = scmp.ne.s32.totalorder %s224, %s227
      %p233 = scmp.eq.s32.totalorder %s20, 0
      %p234 = por %p232, %p233
      %p235 = scmp.ne.s32.totalorder %s224, %s227
      %p236 = scmp.eq.s32.totalorder %s25, 1
      %p237 = por %p235, %p236
      %p238 = scmp.ne.s32.totalorder %s227, %s228
      %p239 = scmp.eq.s32.totalorder %s25, 0
      %p240 = por %p238, %p239
      %p241 = scmp.ne.s32.totalorder %s227, %s228
      %p242 = scmp.eq.s32.totalorder %s26, 1
      %p243 = por %p241, %p242
      %p245 = scmp.ne.s32.totalorder %s228, %s244
      %p246 = scmp.eq.s32.totalorder %s26, 0
      %p247 = por %p245, %p246
      %p248 = scmp.le.s32.totalorder 1, %s20
      %p249 = scmp.lt.s32.totalorder %s20, 3
      %p250 = pnand %p248, %p249
      %p251 = pneg %p250
      // Predicated region
      $region9: #{tpu_custom_call.1} parent=5 // pred_check
        _
      $region10: #{tpu_custom_call.1} parent=5 // pred_check_branch
        %253 = sbr.rel (%p250) target = $region12
      $region11: #{tpu_custom_call.1} parent=5 // pred_region
        %s254 = ssub.s32 %s20, 1
        // Predicated region
        $region13: #{tpu_custom_call.1} parent=11 // pred_check
          %p255 = pneg %p67
        $region14: #{tpu_custom_call.1} parent=11 // pred_check_branch
          %257 = sbr.rel (%p255) target = $region16
        $region15: #{tpu_custom_call.1} parent=11 // pred_region
          _
        $region16: #{tpu_custom_call.1} parent=11 // pred_fallthru
          _
        // Predicated region
        $region17: #{tpu_custom_call.1} parent=11 // pred_check
          %p258 = pneg %p88
        $region18: #{tpu_custom_call.1} parent=11 // pred_check_branch
          %260 = sbr.rel (%p258) target = $region20
        $region19: #{tpu_custom_call.1} parent=11 // pred_region
          _
        $region20: #{tpu_custom_call.1} parent=11 // pred_fallthru
          _
        // Predicated region
        $region21: #{tpu_custom_call.1} parent=11 // pred_check
          %p261 = pneg %p109
        $region22: #{tpu_custom_call.1} parent=11 // pred_check_branch
          %263 = sbr.rel (%p261) target = $region24
        $region23: #{tpu_custom_call.1} parent=11 // pred_region
          _
        $region24: #{tpu_custom_call.1} parent=11 // pred_fallthru
          _
        // Predicated region
        $region25: #{tpu_custom_call.1} parent=11 // pred_check
          %p264 = pneg %p130
        $region26: #{tpu_custom_call.1} parent=11 // pred_check_branch
          %266 = sbr.rel (%p264) target = $region28
        $region27: #{tpu_custom_call.1} parent=11 // pred_region
          _
        $region28: #{tpu_custom_call.1} parent=11 // pred_fallthru
          _
        // Predicated region
        $region29: #{tpu_custom_call.1} parent=11 // pred_check
          %p267 = pneg %p151
        $region30: #{tpu_custom_call.1} parent=11 // pred_check_branch
          %269 = sbr.rel (%p267) target = $region32
        $region31: #{tpu_custom_call.1} parent=11 // pred_region
          _
        $region32: #{tpu_custom_call.1} parent=11 // pred_fallthru
          _
        // Predicated region
        $region33: #{tpu_custom_call.1} parent=11 // pred_check
          %p270 = pneg %p172
        $region34: #{tpu_custom_call.1} parent=11 // pred_check_branch
          %272 = sbr.rel (%p270) target = $region36
        $region35: #{tpu_custom_call.1} parent=11 // pred_region
          _
        $region36: #{tpu_custom_call.1} parent=11 // pred_fallthru
          _
        // Predicated region
        $region37: #{tpu_custom_call.1} parent=11 // pred_check
          %p273 = pneg %p193
        $region38: #{tpu_custom_call.1} parent=11 // pred_check_branch
          %275 = sbr.rel (%p273) target = $region40
        $region39: #{tpu_custom_call.1} parent=11 // pred_region
          _
        $region40: #{tpu_custom_call.1} parent=11 // pred_fallthru
          _
        // Predicated region
        $region41: #{tpu_custom_call.1} parent=11 // pred_check
          %p276 = pneg %p214
        $region42: #{tpu_custom_call.1} parent=11 // pred_check_branch
          %278 = sbr.rel (%p276) target = $region44
        $region43: #{tpu_custom_call.1} parent=11 // pred_region
          _
        $region44: #{tpu_custom_call.1} parent=11 // pred_fallthru
          _
      $region12: #{tpu_custom_call.1} parent=5 // pred_fallthru
        _
      %p279 = scmp.lt.s32.totalorder %s20, 2
      // Predicated region
      $region45: #{tpu_custom_call.1} parent=5 // pred_check
        %p280 = pneg %p279
      $region46: #{tpu_custom_call.1} parent=5 // pred_check_branch
        %282 = sbr.rel (%p280) target = $region48
      $region47: #{tpu_custom_call.1} parent=5 // pred_region
        // Predicated region
        $region49: #{tpu_custom_call.1} parent=47 // pred_check
          %p283 = pneg %p40
        $region50: #{tpu_custom_call.1} parent=47 // pred_check_branch
          %285 = sbr.rel (%p283) target = $region52
        $region51: #{tpu_custom_call.1} parent=47 // pred_region
          %s286 = smul.u32 32, %s20
          %s287 = ssub.s32 38, %s286
          %p288 = scmp.lt.s32.totalorder %s287, 32
          %s289 = scalar_select %p288, %s287, 32
          %s290 = smul.u32 128, %s289
          %p291 = scmp.lt.s32.totalorder %s286, 37
          %s292 = scalar_select %p291, %s286, 37
          %s293 = smul.addr %s292, 8
          %s294 = scalar_lea.vmem %s0, %s293
          %s295 = smul.u32 32, %s20
          %s296 = ssub.s32 38, %s295
          %p297 = scmp.lt.s32.totalorder %s296, 32
          %s298 = scalar_select %p297, %s296, 32
          %s299 = smul.u32 128, %s298
        $region52: #{tpu_custom_call.1} parent=47 // pred_fallthru
          _
      $region48: #{tpu_custom_call.1} parent=5 // pred_fallthru
        _
      %p300 = scmp.le.s32.totalorder 1, %s20
      %p301 = scmp.lt.s32.totalorder %s20, 3
      %p302 = pnand %p300, %p301
      %p303 = pneg %p302
      // Predicated region
      $region53: #{tpu_custom_call.1} parent=5 // pred_check
        _
      $region54: #{tpu_custom_call.1} parent=5 // pred_check_branch
        %305 = sbr.rel (%p302) target = $region56
      $region55: #{tpu_custom_call.1} parent=5 // pred_region
        %s306 = ssub.s32 %s20, 1
        %s307 = smul.u32 32, %s25
        %s308 = ssub.s32 38, %s307
        %p309 = scmp.lt.s32.totalorder %s308, 32
        %s310 = scalar_select %p309, %s308, 32
        %s311 = smul.u32 128, %s310
        %p312 = scmp.lt.s32.totalorder %s307, 37
        %s313 = scalar_select %p312, %s307, 37
        %s314 = smul.addr %s313, 8
        %s315 = scalar_lea.vmem %s0, %s314
        %p316 = pneg %p46
        %p317 = pneg %p43
        %p318 = pneg %p67
        %p319 = pneg %p64
        %p320 = pneg %p88
        %p321 = pneg %p85
        %p322 = pneg %p109
        %p323 = pneg %p106
        %p324 = pneg %p130
        %p325 = pneg %p127
        %p326 = pneg %p151
        %p327 = pneg %p148
        %p328 = pneg %p172
        %p329 = pneg %p169
        %p330 = pneg %p193
        %p331 = pneg %p190
        %p332 = pneg %p214
        %p333 = pneg %p211
        %p334 = pneg %p240
        %p335 = pneg %p237
        %s336 = sand.u32 %s227, 1
        %s337 = scalar_lea.sflag [#allocation4], %s336
        %s338 = sand.u32 %s227, 1
        %s339 = smul.addr %s338, 2
        %s340 = scalar_lea.vmem [#allocation3], %s339
        %s341 = smul.u32 32, %s25
        %s342 = ssub.s32 38, %s341
        %p343 = scmp.lt.s32.totalorder %s342, 32
        %s344 = scalar_select %p343, %s342, 32
        %s345 = smul.u32 128, %s344
        %p346 = scmp.lt.s32.totalorder %s341, 37
        %s347 = scalar_select %p346, %s341, 37
        %s348 = smul.addr %s347, 8
        %s349 = scalar_lea.vmem %s0, %s348
        %s350 = smul.u32 32, %s25
        %s351 = ssub.s32 38, %s350
        %p352 = scmp.lt.s32.totalorder %s351, 32
        %s353 = scalar_select %p352, %s351, 32
        %s354 = smul.u32 128, %s353
        %s355 = smul.u32 2, %s25
        %v356 = vld [vmem:[%s349] sm:$0xff]
        %v357 = vld [vmem:[%s349 + $0x8] sm:$0xff]
        %v358 = vld [vmem:[%s349 + $0x10] sm:$0xff]
        %v359 = vld [vmem:[%s349 + $0x18] sm:$0xff]
        %v360 = vld [vmem:[%s349 + $0x20] sm:$0xff]
        %v361 = vld [vmem:[%s349 + $0x28] sm:$0xff]
        %v362 = vld [vmem:[%s349 + $0x30] sm:$0xff]
        %v363 = vld [vmem:[%s349 + $0x38] sm:$0xff]
        %v364 = vld [vmem:[%s349 + $0x40] sm:$0xff]
        %v365 = vld [vmem:[%s349 + $0x48] sm:$0xff]
        %v366 = vld [vmem:[%s349 + $0x50] sm:$0xff]
        %v367 = vld [vmem:[%s349 + $0x58] sm:$0xff]
        %v368 = vld [vmem:[%s349 + $0x60] sm:$0xff]
        %v369 = vld [vmem:[%s349 + $0x68] sm:$0xff]
        %v370 = vld [vmem:[%s349 + $0x70] sm:$0xff]
        %v371 = vld [vmem:[%s349 + $0x78] sm:$0xff]
        %v372 = vld [vmem:[%s349 + $0x80] sm:$0xff]
        %v373 = vld [vmem:[%s349 + $0x88] sm:$0xff]
        %v374 = vld [vmem:[%s349 + $0x90] sm:$0xff]
        %v375 = vld [vmem:[%s349 + $0x98] sm:$0xff]
        %v376 = vld [vmem:[%s349 + $0xa0] sm:$0xff]
        %v377 = vld [vmem:[%s349 + $0xa8] sm:$0xff]
        %v378 = vld [vmem:[%s349 + $0xb0] sm:$0xff]
        %v379 = vld [vmem:[%s349 + $0xb8] sm:$0xff]
        %v380 = vld [vmem:[%s349 + $0xc0] sm:$0xff]
        %v381 = vld [vmem:[%s349 + $0xc8] sm:$0xff]
        %v382 = vld [vmem:[%s349 + $0xd0] sm:$0xff]
        %v383 = vld [vmem:[%s349 + $0xd8] sm:$0xff]
        %v384 = vld [vmem:[%s349 + $0xe0] sm:$0xff]
        %v385 = vld [vmem:[%s349 + $0xe8] sm:$0xff]
        %v386 = vld [vmem:[%s349 + $0xf0] sm:$0xff]
        %v387 = vld [vmem:[%s349 + $0xf8] sm:$0xff]
        %v388 = vld [vmem:[%s1] sm:$0xff]
        %v389 = vld [vmem:[%s2] sm:$0xff]
        %391 = vset.pattern.permute.xlu0 0
        %392 = vperm.xlu0 %391, %v389
        %v393 = vpop.permute.xlu0 %392
        %vm395 = vcmask 97280
        %v397 = vsel %vm395, %v388, 0
        %v400 = vsel %vm395, %v356, 0
        %v403 = vsel %vm395, %v357, 0
        %v406 = vsel %vm395, %v358, 0
        %v409 = vsel %vm395, %v359, 0
        %v412 = vsel %vm395, %v360, 0
        %v415 = vsel %vm395, %v361, 0
        %v418 = vsel %vm395, %v362, 0
        %v421 = vsel %vm395, %v363, 0
        %v424 = vsel %vm395, %v364, 0
        %v427 = vsel %vm395, %v365, 0
        %v430 = vsel %vm395, %v366, 0
        %v433 = vsel %vm395, %v367, 0
        %v436 = vsel %vm395, %v368, 0
        %v439 = vsel %vm395, %v369, 0
        %v442 = vsel %vm395, %v370, 0
        %v445 = vsel %vm395, %v371, 0
        %v448 = vsel %vm395, %v372, 0
        %v451 = vsel %vm395, %v373, 0
        %v454 = vsel %vm395, %v374, 0
        %v457 = vsel %vm395, %v375, 0
        %v460 = vsel %vm395, %v376, 0
        %v463 = vsel %vm395, %v377, 0
        %v466 = vsel %vm395, %v378, 0
        %v469 = vsel %vm395, %v379, 0
        %v472 = vsel %vm395, %v380, 0
        %v475 = vsel %vm395, %v381, 0
        %v478 = vsel %vm395, %v382, 0
        %v481 = vsel %vm395, %v383, 0
        %v484 = vsel %vm395, %v384, 0
        %v487 = vsel %vm395, %v385, 0
        %v490 = vsel %vm395, %v386, 0
        %v493 = vsel %vm395, %v387, 0
        %495 = vmatprep.subr.mxu0 0.0
        %496 = vmatpush1.xpose.msra.mxu0 %v445
        %497 = vmatprep.subr.mxu0 0.0
        %498 = vmatpush1.xpose.msra.mxu0 %v442
        %499 = vmatprep.subr.mxu0 0.0
        %500 = vmatpush1.xpose.msra.mxu0 %v439
        %501 = vmatprep.subr.mxu0 0.0
        %502 = vmatpush1.xpose.msra.mxu0 %v436
        %503 = vmatprep.subr.mxu0 0.0
        %504 = vmatpush1.xpose.msra.mxu0 %v433
        %505 = vmatprep.subr.mxu0 0.0
        %506 = vmatpush1.xpose.msra.mxu0 %v430
        %507 = vmatprep.subr.mxu0 0.0
        %508 = vmatpush1.xpose.msra.mxu0 %v427
        %509 = vmatprep.subr.mxu0 0.0
        %510 = vmatpush1.xpose.msra.mxu0 %v424
        %511 = vmatprep.subr.mxu0 0.0
        %512 = vmatpush1.xpose.msra.mxu0 %v421
        %513 = vmatprep.subr.mxu0 0.0
        %514 = vmatpush1.xpose.msra.mxu0 %v418
        %515 = vmatprep.subr.mxu0 0.0
        %516 = vmatpush1.xpose.msra.mxu0 %v415
        %517 = vmatprep.subr.mxu0 0.0
        %518 = vmatpush1.xpose.msra.mxu0 %v412
        %519 = vmatprep.subr.mxu0 0.0
        %520 = vmatpush1.xpose.msra.mxu0 %v409
        %521 = vmatprep.subr.mxu0 0.0
        %522 = vmatpush1.xpose.msra.mxu0 %v406
        %523 = vmatprep.subr.mxu0 0.0
        %524 = vmatpush1.xpose.msra.mxu0 %v403
        %525 = vmatprep.subr.mxu0 0.0
        %526 = vmatpush1.xpose.msra.mxu0 %v400
        %527 = vmatprep.subr.mxu0 0.0
        %528 = vmatpush2.xpose.msra.mxu0 %v493
        %529 = vmatprep.subr.mxu0 0.0
        %530 = vmatpush2.xpose.msra.mxu0 %v490
        %531 = vmatprep.subr.mxu0 0.0
        %532 = vmatpush2.xpose.msra.mxu0 %v487
        %533 = vmatprep.subr.mxu0 0.0
        %534 = vmatpush2.xpose.msra.mxu0 %v484
        %535 = vmatprep.subr.mxu0 0.0
        %536 = vmatpush2.xpose.msra.mxu0 %v481
        %537 = vmatprep.subr.mxu0 0.0
        %538 = vmatpush2.xpose.msra.mxu0 %v478
        %539 = vmatprep.subr.mxu0 0.0
        %540 = vmatpush2.xpose.msra.mxu0 %v475
        %541 = vmatprep.subr.mxu0 0.0
        %542 = vmatpush2.xpose.msra.mxu0 %v472
        %543 = vmatprep.subr.mxu0 0.0
        %544 = vmatpush2.xpose.msra.mxu0 %v469
        %545 = vmatprep.subr.mxu0 0.0
        %546 = vmatpush2.xpose.msra.mxu0 %v466
        %547 = vmatprep.subr.mxu0 0.0
        %548 = vmatpush2.xpose.msra.mxu0 %v463
        %549 = vmatprep.subr.mxu0 0.0
        %550 = vmatpush2.xpose.msra.mxu0 %v460
        %551 = vmatprep.subr.mxu0 0.0
        %552 = vmatpush2.xpose.msra.mxu0 %v457
        %553 = vmatprep.subr.mxu0 0.0
        %554 = vmatpush2.xpose.msra.mxu0 %v454
        %555 = vmatprep.subr.mxu0 0.0
        %556 = vmatpush2.xpose.msra.mxu0 %v451
        %557 = vmatprep.subr.mxu0 0.0
        %558 = vmatpush2.xpose.msra.mxu0 %v448
        %559 = vmatprep.mubr.f32.mxu0 0.0
        %560 = vmatmul.mubr.f32.gmra.mxu0 %v397
        %v561 = vpop.f32.mrf.mxu0
        %v562 = vadd.f32 %v393, %v561
        %v563 = vpop.f32.mrf.mxu0
        %v564 = vadd.f32 %v393, %v563
        %565 = vdwg.mxu0
        %v566 = vmax.f32 %v562, 0.0
        %v567 = vmax.f32 %v564, 0.0
        %v568 = vld [vmem:[%s3] sm:$0xff]
        %v569 = vld [vmem:[%s3 + $0x8] sm:$0xff]
        %v570 = vld [vmem:[%s4] sm:$0xff]
        %v571 = vld [vmem:[%s4 + $0x8] sm:$0xff]
        %573 = vset.pattern.permute.xlu0 0
        %574 = vperm.xlu0 %573, %v570
        %v575 = vpop.permute.xlu0 %574
        %578 = vset.pattern.permute.xlu0 0
        %579 = vperm.xlu0 %578, %v571
        %v580 = vpop.permute.xlu0 %579
        %vm582 = vcmask 64512
        %v584 = vsel %vm582, %v568, 0
        %v587 = vsel %vm582, %v569, 0
        %589 = vmatprep.subr.mxu0 0.0
        %590 = vmatpush1.msra.mxu0 0.0
        %591 = vmatprep.subr.mxu0 0.0
        %592 = vmatpush1.msra.mxu0 0.0
        %593 = vmatprep.subr.mxu0 0.0
        %594 = vmatpush1.msra.mxu0 0.0
        %595 = vmatprep.subr.mxu0 0.0
        %596 = vmatpush1.msra.mxu0 0.0
        %597 = vmatprep.subr.mxu0 0.0
        %598 = vmatpush1.msra.mxu0 0.0
        %599 = vmatprep.subr.mxu0 0.0
        %600 = vmatpush1.msra.mxu0 0.0
        %601 = vmatprep.subr.mxu0 0.0
        %602 = vmatpush1.msra.mxu0 0.0
        %603 = vmatprep.subr.mxu0 0.0
        %604 = vmatpush1.msra.mxu0 0.0
        %605 = vmatprep.subr.mxu0 0.0
        %606 = vmatpush1.msra.mxu0 0.0
        %607 = vmatprep.subr.mxu0 0.0
        %608 = vmatpush1.msra.mxu0 0.0
        %609 = vmatprep.subr.mxu0 0.0
        %610 = vmatpush1.msra.mxu0 0.0
        %611 = vmatprep.subr.mxu0 0.0
        %612 = vmatpush1.msra.mxu0 0.0
        %613 = vmatprep.subr.mxu0 0.0
        %614 = vmatpush1.msra.mxu0 0.0
        %615 = vmatprep.subr.mxu0 0.0
        %616 = vmatpush1.msra.mxu0 0.0
        %617 = vmatprep.subr.mxu0 0.0
        %618 = vmatpush1.msra.mxu0 0.0
        %619 = vmatprep.subr.mxu0 %v567
        %620 = vmatpush1.msra.mxu0 %v566
        %621 = vmatprep.subr.mxu0 0.0
        %622 = vmatpush2.msra.mxu0 0.0
        %623 = vmatprep.subr.mxu0 0.0
        %624 = vmatpush2.msra.mxu0 0.0
        %625 = vmatprep.subr.mxu0 0.0
        %626 = vmatpush2.msra.mxu0 0.0
        %627 = vmatprep.subr.mxu0 0.0
        %628 = vmatpush2.msra.mxu0 0.0
        %629 = vmatprep.subr.mxu0 0.0
        %630 = vmatpush2.msra.mxu0 0.0
        %631 = vmatprep.subr.mxu0 0.0
        %632 = vmatpush2.msra.mxu0 0.0
        %633 = vmatprep.subr.mxu0 0.0
        %634 = vmatpush2.msra.mxu0 0.0
        %635 = vmatprep.subr.mxu0 0.0
        %636 = vmatpush2.msra.mxu0 0.0
        %637 = vmatprep.subr.mxu0 0.0
        %638 = vmatpush2.msra.mxu0 0.0
        %639 = vmatprep.subr.mxu0 0.0
        %640 = vmatpush2.msra.mxu0 0.0
        %641 = vmatprep.subr.mxu0 0.0
        %642 = vmatpush2.msra.mxu0 0.0
        %643 = vmatprep.subr.mxu0 0.0
        %644 = vmatpush2.msra.mxu0 0.0
        %645 = vmatprep.subr.mxu0 0.0
        %646 = vmatpush2.msra.mxu0 0.0
        %647 = vmatprep.subr.mxu0 0.0
        %648 = vmatpush2.msra.mxu0 0.0
        %649 = vmatprep.subr.mxu0 0.0
        %650 = vmatpush2.msra.mxu0 0.0
        %651 = vmatprep.subr.mxu0 0.0
        %652 = vmatpush2.msra.mxu0 0.0
        %653 = vmatprep.mubr.f32.mxu0 0.0
        %654 = vmatmul.mubr.f32.gmra.mxu0 %v584
        %v655 = vpop.f32.mrf.mxu0
        %v656 = vadd.f32 %v575, %v655
        %v657 = vpop.f32.mrf.mxu0
        %v658 = vadd.f32 %v575, %v657
        %659 = vmatprep.mubr.f32.mxu0 0.0
        %660 = vmatmul.mubr.f32.gmra.mxu0 %v587
        %v661 = vpop.f32.mrf.mxu0
        %v662 = vadd.f32 %v580, %v661
        %v663 = vpop.f32.mrf.mxu0
        %v664 = vadd.f32 %v580, %v663
        %665 = vdwg.mxu0
        %v666 = vmax.f32 %v656, 0.0
        %v667 = vmax.f32 %v658, 0.0
        %v668 = vmax.f32 %v662, 0.0
        %v669 = vmax.f32 %v664, 0.0
        %v670 = vld [vmem:[%s5] sm:$0xff]
        %v671 = vld [vmem:[%s5 + $0x8] sm:$0xff]
        %v672 = vld [vmem:[%s5 + $0x10] sm:$0xff]
        %v673 = vld [vmem:[%s5 + $0x18] sm:$0xff]
        %v674 = vld [vmem:[%s6] sm:$0xff]
        %v675 = vld [vmem:[%s6 + $0x8] sm:$0xff]
        %v676 = vld [vmem:[%s6 + $0x10] sm:$0xff]
        %v677 = vld [vmem:[%s6 + $0x18] sm:$0xff]
        %679 = vset.pattern.permute.xlu0 0
        %680 = vperm.xlu0 %679, %v674
        %v681 = vpop.permute.xlu0 %680
        %684 = vset.pattern.permute.xlu0 0
        %685 = vperm.xlu0 %684, %v675
        %v686 = vpop.permute.xlu0 %685
        %689 = vset.pattern.permute.xlu0 0
        %690 = vperm.xlu0 %689, %v676
        %v691 = vpop.permute.xlu0 %690
        %694 = vset.pattern.permute.xlu0 0
        %695 = vperm.xlu0 %694, %v677
        %v696 = vpop.permute.xlu0 %695
        %vm698 = vcmask 130048
        %v700 = vsel %vm698, %v670, 0
        %v703 = vsel %vm698, %v671, 0
        %v706 = vsel %vm698, %v672, 0
        %v709 = vsel %vm698, %v673, 0
        %711 = vmatprep.subr.mxu0 0.0
        %712 = vmatpush1.msra.mxu0 0.0
        %713 = vmatprep.subr.mxu0 0.0
        %714 = vmatpush1.msra.mxu0 0.0
        %715 = vmatprep.subr.mxu0 0.0
        %716 = vmatpush1.msra.mxu0 0.0
        %717 = vmatprep.subr.mxu0 0.0
        %718 = vmatpush1.msra.mxu0 0.0
        %719 = vmatprep.subr.mxu0 0.0
        %720 = vmatpush1.msra.mxu0 0.0
        %721 = vmatprep.subr.mxu0 0.0
        %722 = vmatpush1.msra.mxu0 0.0
        %723 = vmatprep.subr.mxu0 0.0
        %724 = vmatpush1.msra.mxu0 0.0
        %725 = vmatprep.subr.mxu0 0.0
        %726 = vmatpush1.msra.mxu0 0.0
        %727 = vmatprep.subr.mxu0 0.0
        %728 = vmatpush1.msra.mxu0 0.0
        %729 = vmatprep.subr.mxu0 0.0
        %730 = vmatpush1.msra.mxu0 0.0
        %731 = vmatprep.subr.mxu0 0.0
        %732 = vmatpush1.msra.mxu0 0.0
        %733 = vmatprep.subr.mxu0 0.0
        %734 = vmatpush1.msra.mxu0 0.0
        %735 = vmatprep.subr.mxu0 0.0
        %736 = vmatpush1.msra.mxu0 0.0
        %737 = vmatprep.subr.mxu0 0.0
        %738 = vmatpush1.msra.mxu0 0.0
        %739 = vmatprep.subr.mxu0 %v669
        %740 = vmatpush1.msra.mxu0 %v668
        %741 = vmatprep.subr.mxu0 %v667
        %742 = vmatpush1.msra.mxu0 %v666
        %743 = vmatprep.subr.mxu0 0.0
        %744 = vmatpush2.msra.mxu0 0.0
        %745 = vmatprep.subr.mxu0 0.0
        %746 = vmatpush2.msra.mxu0 0.0
        %747 = vmatprep.subr.mxu0 0.0
        %748 = vmatpush2.msra.mxu0 0.0
        %749 = vmatprep.subr.mxu0 0.0
        %750 = vmatpush2.msra.mxu0 0.0
        %751 = vmatprep.subr.mxu0 0.0
        %752 = vmatpush2.msra.mxu0 0.0
        %753 = vmatprep.subr.mxu0 0.0
        %754 = vmatpush2.msra.mxu0 0.0
        %755 = vmatprep.subr.mxu0 0.0
        %756 = vmatpush2.msra.mxu0 0.0
        %757 = vmatprep.subr.mxu0 0.0
        %758 = vmatpush2.msra.mxu0 0.0
        %759 = vmatprep.subr.mxu0 0.0
        %760 = vmatpush2.msra.mxu0 0.0
        %761 = vmatprep.subr.mxu0 0.0
        %762 = vmatpush2.msra.mxu0 0.0
        %763 = vmatprep.subr.mxu0 0.0
        %764 = vmatpush2.msra.mxu0 0.0
        %765 = vmatprep.subr.mxu0 0.0
        %766 = vmatpush2.msra.mxu0 0.0
        %767 = vmatprep.subr.mxu0 0.0
        %768 = vmatpush2.msra.mxu0 0.0
        %769 = vmatprep.subr.mxu0 0.0
        %770 = vmatpush2.msra.mxu0 0.0
        %771 = vmatprep.subr.mxu0 0.0
        %772 = vmatpush2.msra.mxu0 0.0
        %773 = vmatprep.subr.mxu0 0.0
        %774 = vmatpush2.msra.mxu0 0.0
        %775 = vmatprep.mubr.f32.mxu0 0.0
        %776 = vmatmul.mubr.f32.gmra.mxu0 %v700
        %v777 = vpop.f32.mrf.mxu0
        %v778 = vadd.f32 %v681, %v777
        %v779 = vpop.f32.mrf.mxu0
        %v780 = vadd.f32 %v681, %v779
        %781 = vmatprep.mubr.f32.mxu0 0.0
        %782 = vmatmul.mubr.f32.gmra.mxu0 %v703
        %v783 = vpop.f32.mrf.mxu0
        %v784 = vadd.f32 %v686, %v783
        %v785 = vpop.f32.mrf.mxu0
        %v786 = vadd.f32 %v686, %v785
        %787 = vmatprep.mubr.f32.mxu0 0.0
        %788 = vmatmul.mubr.f32.gmra.mxu0 %v706
        %v789 = vpop.f32.mrf.mxu0
        %v790 = vadd.f32 %v691, %v789
        %v791 = vpop.f32.mrf.mxu0
        %v792 = vadd.f32 %v691, %v791
        %793 = vmatprep.mubr.f32.mxu0 0.0
        %794 = vmatmul.mubr.f32.gmra.mxu0 %v709
        %v795 = vpop.f32.mrf.mxu0
        %v796 = vadd.f32 %v696, %v795
        %v797 = vpop.f32.mrf.mxu0
        %v798 = vadd.f32 %v696, %v797
        %799 = vdwg.mxu0
        %v800 = vmax.f32 %v778, 0.0
        %v801 = vmax.f32 %v780, 0.0
        %v802 = vmax.f32 %v784, 0.0
        %v803 = vmax.f32 %v786, 0.0
        %v804 = vmax.f32 %v790, 0.0
        %v805 = vmax.f32 %v792, 0.0
        %v806 = vmax.f32 %v796, 0.0
        %v807 = vmax.f32 %v798, 0.0
        %v808 = vld [vmem:[%s7] sm:$0x1]
        %v809 = vld [vmem:[#allocation2] sm:$0x1]
        %811 = vset.pattern.permute.xlu0 0
        %812 = vperm.xlu0 %811, %v809
        %v813 = vpop.permute.xlu0 %812
        %v815 = vlaneseq
        %v816 = vshrl.u32 %v815, 7
        %v817 = vsub.s32 0, %v816
        %v818 = vrot.slane %v813, %v817
        %vm819 = vcmask 261120
        %v821 = vsel %vm819, %v808, 0
        %823 = vmatprep.subr.mxu0 0.0
        %824 = vmatpush1.msra.mxu0 0.0
        %825 = vmatprep.subr.mxu0 0.0
        %826 = vmatpush1.msra.mxu0 0.0
        %827 = vmatprep.subr.mxu0 0.0
        %828 = vmatpush1.msra.mxu0 0.0
        %829 = vmatprep.subr.mxu0 0.0
        %830 = vmatpush1.msra.mxu0 0.0
        %831 = vmatprep.subr.mxu0 0.0
        %832 = vmatpush1.msra.mxu0 0.0
        %833 = vmatprep.subr.mxu0 0.0
        %834 = vmatpush1.msra.mxu0 0.0
        %835 = vmatprep.subr.mxu0 0.0
        %836 = vmatpush1.msra.mxu0 0.0
        %837 = vmatprep.subr.mxu0 0.0
        %838 = vmatpush1.msra.mxu0 0.0
        %839 = vmatprep.subr.mxu0 0.0
        %840 = vmatpush1.msra.mxu0 0.0
        %841 = vmatprep.subr.mxu0 0.0
        %842 = vmatpush1.msra.mxu0 0.0
        %843 = vmatprep.subr.mxu0 0.0
        %844 = vmatpush1.msra.mxu0 0.0
        %845 = vmatprep.subr.mxu0 0.0
        %846 = vmatpush1.msra.mxu0 0.0
        %847 = vmatprep.subr.mxu0 %v807
        %848 = vmatpush1.msra.mxu0 %v806
        %849 = vmatprep.subr.mxu0 %v805
        %850 = vmatpush1.msra.mxu0 %v804
        %851 = vmatprep.subr.mxu0 %v803
        %852 = vmatpush1.msra.mxu0 %v802
        %853 = vmatprep.subr.mxu0 %v801
        %854 = vmatpush1.msra.mxu0 %v800
        %855 = vmatprep.subr.mxu0 0.0
        %856 = vmatpush2.msra.mxu0 0.0
        %857 = vmatprep.subr.mxu0 0.0
        %858 = vmatpush2.msra.mxu0 0.0
        %859 = vmatprep.subr.mxu0 0.0
        %860 = vmatpush2.msra.mxu0 0.0
        %861 = vmatprep.subr.mxu0 0.0
        %862 = vmatpush2.msra.mxu0 0.0
        %863 = vmatprep.subr.mxu0 0.0
        %864 = vmatpush2.msra.mxu0 0.0
        %865 = vmatprep.subr.mxu0 0.0
        %866 = vmatpush2.msra.mxu0 0.0
        %867 = vmatprep.subr.mxu0 0.0
        %868 = vmatpush2.msra.mxu0 0.0
        %869 = vmatprep.subr.mxu0 0.0
        %870 = vmatpush2.msra.mxu0 0.0
        %871 = vmatprep.subr.mxu0 0.0
        %872 = vmatpush2.msra.mxu0 0.0
        %873 = vmatprep.subr.mxu0 0.0
        %874 = vmatpush2.msra.mxu0 0.0
        %875 = vmatprep.subr.mxu0 0.0
        %876 = vmatpush2.msra.mxu0 0.0
        %877 = vmatprep.subr.mxu0 0.0
        %878 = vmatpush2.msra.mxu0 0.0
        %879 = vmatprep.subr.mxu0 0.0
        %880 = vmatpush2.msra.mxu0 0.0
        %881 = vmatprep.subr.mxu0 0.0
        %882 = vmatpush2.msra.mxu0 0.0
        %883 = vmatprep.subr.mxu0 0.0
        %884 = vmatpush2.msra.mxu0 0.0
        %885 = vmatprep.subr.mxu0 0.0
        %886 = vmatpush2.msra.mxu0 0.0
        %887 = vmatprep.mubr.f32.mxu0 0.0
        %888 = vmatmul.mubr.f32.gmra.mxu0 %v821
        %v889 = vpop.f32.mrf.mxu0
        %v890 = vadd.f32 %v818, %v889
        %v891 = vpop.f32.mrf.mxu0
        %v892 = vadd.f32 %v818, %v891
        %893 = vdwg.mxu0
        %v894 = vxor.u32 %v890, 2147483648
        %v895 = vxor.u32 %v892, 2147483648
        %v896 = vmul.f32 %v894, 1.442695
        %v897 = vpow.pop %v896
        %v898 = vmul.f32 %v895, 1.442695
        %v899 = vpow.pop %v898
        %v900 = vadd.f32 %v897, 1.0
        %v901 = vadd.f32 %v899, 1.0
        %v902 = vrcp.pop %v900
        %v903 = vmul.f32 1.0, %v902
        %v904 = vrcp.pop %v901
        %v905 = vmul.f32 1.0, %v904
        %v908 = vcombine.low %v903, %v905
        %v910 = vunpack.c.l.s4 1966171168
        %v911 = vunpack.c.0.s8 %v910
        %v912 = vlaneseq
        %v913 = vshrl.u32 %v912, 7
        %v914 = vsub.s32 %v911, %v913
        %v915 = vrot.slane %v908, %v914
        %v917 = vunpack.c.l.s4 1966171168
        %v918 = vunpack.c.0.s8 %v917
        %v919 = vlaneseq
        %v920 = vshrl.u32 %v919, 7
        %v921 = vsub.s32 %v918, %v920
        %v922 = vrot.slane %v915, %v921
        %v924 = vlaneseq
        %vm925 = vcmp.ge.s32.totalorder %v924, 0
        %vm926 = vcmp.lt.s32.totalorder %v924, 256
        %vm927 = vmand %vm925, %vm926
        %928 = vst.msk [vmem:[%s340] sm:$0x3] %vm927, %v922
        %s929 = sand.u32 %s227, 1
        %s930 = scalar_lea.sflag [#allocation4], %s929
        %s931 = sand.u32 %s227, 1
        %s932 = smul.addr %s931, 2
        %s933 = scalar_lea.vmem [#allocation3], %s932
        // Predicated region
        $region57: #{tpu_custom_call.1} parent=55 // pred_check
          %p934 = pneg %p237
        $region58: #{tpu_custom_call.1} parent=55 // pred_check_branch
          %936 = sbr.rel (%p934) target = $region60
        $region59: #{tpu_custom_call.1} parent=55 // pred_region
          %s937 = smul.u32 2, %s25
          %s939 = ssub.s32 32, 32
          %940 = vsyncadd %s930, %s939
          %s941 = smul.addr %s937, 16
          %s942 = scalar_lea.hbm %s9, %s941
          %s944 = sshll.u32 %s933, 4
          %s945 = int_to_ptr.vmem [resolvable:$true] %s944
          %947 = dma.vmem_to_hbm [thread:$0]  %s945, 32, %s942, %s930
        $region60: #{tpu_custom_call.1} parent=55 // pred_fallthru
          _
      $region56: #{tpu_custom_call.1} parent=5 // pred_fallthru
        _
      %p948 = scmp.le.s32.totalorder 2, %s20
      // Predicated region
      $region61: #{tpu_custom_call.1} parent=5 // pred_check
        %p949 = pneg %p948
      $region62: #{tpu_custom_call.1} parent=5 // pred_check_branch
        %951 = sbr.rel (%p949) target = $region64
      $region63: #{tpu_custom_call.1} parent=5 // pred_region
        %s952 = ssub.s32 %s20, 2
        // Predicated region
        $region65: #{tpu_custom_call.1} parent=63 // pred_check
          %p953 = pneg %p243
        $region66: #{tpu_custom_call.1} parent=63 // pred_check_branch
          %955 = sbr.rel (%p953) target = $region68
        $region67: #{tpu_custom_call.1} parent=63 // pred_region
          %s956 = sand.u32 %s228, 1
          %s957 = scalar_lea.sflag [#allocation4], %s956
          %s958 = sand.u32 %s228, 1
          %s959 = smul.addr %s958, 2
          %s960 = scalar_lea.vmem [#allocation3], %s959
          %961 = dma.done %s957, 32
        $region68: #{tpu_custom_call.1} parent=63 // pred_fallthru
          _
      $region64: #{tpu_custom_call.1} parent=5 // pred_fallthru
        _
    $region6: #{tpu_custom_call.1} parent=1 // loop_footer
      %s24 = sadd.s32 1, %s20
    $region7: #{tpu_custom_call.1} parent=1 // loop_footer_branch
      %19 = sbr.rel target = $region3
    $region8: #{tpu_custom_call.1} parent=1 // loop_exit
      _
    %962 = vsyncpa [#allocation4], 1
    %s963 = scalar_lea.sflag [#allocation4], 1
    %964 = vsyncpa %s963, 1

</llo_original>
